<compile_context>
chip_gen: v5e
topology: v5e:2x2
jax: 0.10.0
libtpu: 0.0.40
codegen_flags: <defaults>
</compile_context>

<pallas_src>
import functools

import jax
import jax.numpy as jnp
from jax.experimental import pallas as pl
from jax.experimental.pallas import tpu as pltpu


def _vmem_capacity_bytes():
    """Physical VMEM per TensorCore (128 MiB on v5e/v6e, 64 MiB on v7x).
    Falls back to the tightest generation (64 MiB) if the query fails."""
    try:
        info = pltpu.get_tpu_info()
        cap = getattr(info, "vmem_capacity_bytes", None)
        if cap:
            return int(cap)
    except Exception:
        pass
    return 64 << 20


def _choose_t_hw(rows, hw_padded, itemsize, pair_budget_bytes):
    """Largest HW tile that (a) is a multiple of 128 (lane alignment on the
    contraction dim), (b) divides the 128-padded HW, and (c) keeps the two
    double-buffered (rows, T_HW) tiles within `pair_budget_bytes`."""
    m = hw_padded // 128
    cap_d = max(1, pair_budget_bytes // (2 * rows * itemsize * 128))
    cap_d = min(cap_d, m)
    for d in range(cap_d, 0, -1):
        if m % d == 0:
            return 128 * d
    return 128


def _gram_kernel(f_ref, o_ref, acc_ref, *, scale, feed_dtype):
    k = pl.program_id(1)

    @pl.when(k == 0)
    def _():
        acc_ref[...] = jnp.zeros_like(acc_ref)

    # (BB, C, T_HW) tile; bf16 feed, f32 accumulation on the MXU.  Both
    # operands contract over HW (NT form) -> no transposed copy materialized.
    f = f_ref[...].astype(feed_dtype)
    acc_ref[...] += jnp.einsum(
        "bck,bdk->bcd", f, f, preferred_element_type=jnp.float32
    )

    @pl.when(k == pl.num_programs(1) - 1)
    def _():
        o_ref[...] = (acc_ref[...] * scale).astype(o_ref.dtype)


def gram_matrix(x, *, feed_dtype=jnp.bfloat16):
    """x: (N, C, H, W) -> (N, C, C); matches torch GramMatrix.forward
    (G = F @ F^T / (C*H*W) per sample).  MXU feed in `feed_dtype` (bf16 by
    default; pass jnp.float32 for an exact f32 matmul)."""
    n, c, h, w = x.shape
    hw = h * w
    scale = 1.0 / float(c * hw)  # = 1 / (b*c*d); padded zeros add nothing.

    feats = x.reshape(n, c, hw)  # free view/reshape in XLA

    # Lane-align the contraction axis (pad HW up to a multiple of 128).
    hw_p = ((hw + 127) // 128) * 128

    # Block BB batch samples per grid step when C is small so the MXU sees
    # >= ~128 rows per step and the per-step overhead / DMA bursts amortize.
    bb = 1 if c >= 128 else max(1, min(n, 128 // c))
    n_p = ((n + bb - 1) // bb) * bb

    if hw_p != hw or n_p != n:
        feats = jnp.pad(feats, ((0, n_p - n), (0, 0), (0, hw_p - hw)))

    itemsize = feats.dtype.itemsize
    rows = bb * c

    # Generation-aware VMEM budgeting.
    vmem_cap = _vmem_capacity_bytes()
    io_bytes = 3 * bb * c * c * 4              # acc + double-buffered output
    min_pair = 2 * rows * 128 * itemsize       # two minimal 128-lane tiles
    base_limit = (vmem_cap * 3) // 4           # ~96 MiB v5e/v6e, ~48 MiB v7x
    pair_budget = min(vmem_cap // 2,
                      max(base_limit - io_bytes - (8 << 20), min_pair))
    vmem_limit = int(min(vmem_cap,
                         max(base_limit, pair_budget + io_bytes + (8 << 20))))

    t_hw = _choose_t_hw(rows, hw_p, itemsize, pair_budget)
    k_steps = hw_p // t_hw

    kernel = functools.partial(_gram_kernel, scale=scale, feed_dtype=feed_dtype)

    out = pl.pallas_call(
        kernel,
        out_shape=jax.ShapeDtypeStruct((n_p, c, c), jnp.float32),
        grid_spec=pltpu.PrefetchScalarGridSpec(
            num_scalar_prefetch=0,
            grid=(n_p // bb, k_steps),
            in_specs=[pl.BlockSpec((bb, c, t_hw), lambda i, k: (i, 0, k))],
            out_specs=pl.BlockSpec((bb, c, c), lambda i, k: (i, 0, 0)),
            scratch_shapes=[pltpu.VMEM((bb, c, c), jnp.float32)],
        ),
        compiler_params=pltpu.CompilerParams(
            dimension_semantics=("parallel", "arbitrary"),
            vmem_limit_bytes=vmem_limit,
        ),
        cost_estimate=pl.CostEstimate(
            flops=2 * n_p * c * c * hw_p,
            bytes_accessed=n_p * c * hw_p * itemsize + n_p * c * c * 4,
            transcendentals=0,
        ),
    )(feats)

    return out[:n] if n_p != n else out


def _gram_ref(x, feed_dtype=jnp.float32):
    n, c, h, w = x.shape
    f = x.reshape(n, c, h * w).astype(feed_dtype).astype(jnp.float32)
    return jnp.einsum("bik,bjk->bij", f, f) / (c * h * w)


if __name__ == "__main__":
    key = jax.random.PRNGKey(0)

    # Primary shape implied by the module (batch=2, channels=4, spatial=16).
    x = jax.random.normal(key, (2, 4, 16, 16), dtype=jnp.float32)
    out = jax.block_until_ready(gram_matrix(x))
    assert out.shape == (2, 4, 4), out.shape
    # Tight check vs a reference using the same bf16 MXU feed.
    assert jnp.allclose(out, _gram_ref(x, jnp.bfloat16), atol=1e-5, rtol=1e-4), \
        "mismatch vs bf16-feed reference"
    # Loose check vs the exact f32 reference (bf16-feed tolerance).
    assert jnp.allclose(out, _gram_ref(x, jnp.float32), atol=5e-3, rtol=5e-2), \
        "mismatch vs f32 reference"

    # Padding paths: non-128-aligned HW (81 -> 128) and a batch (3) that the
    # small-C batch block (BB=2 for C=64) does not divide.
    x2 = jax.random.normal(jax.random.PRNGKey(1), (3, 64, 9, 9), dtype=jnp.float32)
    out2 = jax.block_until_ready(gram_matrix(x2))
    assert out2.shape == (3, 64, 64), out2.shape
    assert jnp.allclose(out2, _gram_ref(x2, jnp.float32), atol=5e-3, rtol=5e-2), \
        "mismatch vs f32 reference (padded case)"

    print("KERNEL_OK")
</pallas_src>

<mosaic_0001>
module attributes {stable_mosaic.version = 11 : i64} {
  func.func @_gram_kernel(%arg0: i32, %arg1: i32, %arg2: memref<2x4x256xf32, #tpu.memory_space<vmem>>, %arg3: memref<2x4x4xf32, #tpu.memory_space<vmem>>, %arg4: memref<2x4x4xf32, #tpu.memory_space<vmem>>) attributes {dimension_semantics = [#tpu.dimension_semantics<parallel>, #tpu.dimension_semantics<arbitrary>], iteration_bounds = array<i64: 1, 1>, scalar_prefetch = 0 : i64, scratch_operands = 1 : i64, tpu.core_type = #tpu.core_type<tc>, window_params = [{transform_indices = @transform_0, window_bounds = array<i64: 2, 4, 256>}, {transform_indices = @transform_1, window_bounds = array<i64: 2, 4, 4>}]} {
    %c0_i32 = arith.constant 0 : i32
    %0 = arith.cmpi eq, %arg1, %c0_i32 : i32
    %1 = arith.extui %0 : i1 to i32
    %c0_i32_0 = arith.constant 0 : i32
    %2 = arith.cmpi ne, %1, %c0_i32_0 : i32
    scf.if %2 {
      %cst_11 = arith.constant 0.000000e+00 : f32
      %12 = vector.broadcast %cst_11 : f32 to vector<2x4x4xf32>
      %c0_12 = arith.constant 0 : index
      %c0_13 = arith.constant 0 : index
      %c0_14 = arith.constant 0 : index
      %13 = vector.load %arg4[%c0_12, %c0_13, %c0_14] : memref<2x4x4xf32, #tpu.memory_space<vmem>>, vector<2x4x4xf32>
      tpu.vector_store %arg4[%c0_12, %c0_13, %c0_14], %12 {strides = array<i32>} : memref<2x4x4xf32, #tpu.memory_space<vmem>>, vector<2x4x4xf32>,
    } else {
    }
    %c0 = arith.constant 0 : index
    %c0_1 = arith.constant 0 : index
    %c0_2 = arith.constant 0 : index
    %3 = vector.load %arg2[%c0, %c0_1, %c0_2] : memref<2x4x256xf32, #tpu.memory_space<vmem>>, vector<2x4x256xf32>
    %4 = arith.truncf %3 : vector<2x4x256xf32> to vector<2x4x256xbf16>
    %c0_3 = arith.constant 0 : index
    %c0_4 = arith.constant 0 : index
    %c0_5 = arith.constant 0 : index
    %5 = vector.load %arg4[%c0_3, %c0_4, %c0_5] : memref<2x4x4xf32, #tpu.memory_space<vmem>>, vector<2x4x4xf32>
    "tpu.trace_start"() <{level = 10 : i32, message = "bck,bdk->bcd"}> : () -> ()
    %cst = arith.constant dense<0.000000e+00> : vector<2x4x4xf32>
    %6 = tpu.matmul %4, %4, %cst {dimension_numbers = #tpu.dot_dimension_numbers<[2], [2], [1], [1], [0, 0, 0, 1, 1, 1], [0], [0]>} : vector<2x4x256xbf16>, vector<2x4x256xbf16>, vector<2x4x4xf32> -> vector<2x4x4xf32>
    "tpu.trace_stop"() : () -> ()
    %7 = arith.addf %5, %6 : vector<2x4x4xf32>
    %c0_6 = arith.constant 0 : index
    %c0_7 = arith.constant 0 : index
    %c0_8 = arith.constant 0 : index
    %8 = vector.load %arg4[%c0_6, %c0_7, %c0_8] : memref<2x4x4xf32, #tpu.memory_space<vmem>>, vector<2x4x4xf32>
    tpu.vector_store %arg4[%c0_6, %c0_7, %c0_8], %7 {strides = array<i32>} : memref<2x4x4xf32, #tpu.memory_space<vmem>>, vector<2x4x4xf32>,
    %c0_i32_9 = arith.constant 0 : i32
    %9 = arith.cmpi eq, %arg1, %c0_i32_9 : i32
    %10 = arith.extui %9 : i1 to i32
    %c0_i32_10 = arith.constant 0 : i32
    %11 = arith.cmpi ne, %10, %c0_i32_10 : i32
    scf.if %11 {
      %c0_11 = arith.constant 0 : index
      %c0_12 = arith.constant 0 : index
      %c0_13 = arith.constant 0 : index
      %12 = vector.load %arg4[%c0_11, %c0_12, %c0_13] : memref<2x4x4xf32, #tpu.memory_space<vmem>>, vector<2x4x4xf32>
      %cst_14 = arith.constant 9.765625E-4 : f32
      %13 = vector.broadcast %cst_14 : f32 to vector<2x4x4xf32>
      %14 = arith.mulf %12, %13 : vector<2x4x4xf32>
      %c0_15 = arith.constant 0 : index
      %c0_16 = arith.constant 0 : index
      %c0_17 = arith.constant 0 : index
      %15 = vector.load %arg3[%c0_15, %c0_16, %c0_17] : memref<2x4x4xf32, #tpu.memory_space<vmem>>, vector<2x4x4xf32>
      tpu.vector_store %arg3[%c0_15, %c0_16, %c0_17], %14 {strides = array<i32>} : memref<2x4x4xf32, #tpu.memory_space<vmem>>, vector<2x4x4xf32>,
    } else {
    }
    return
  }
  func.func @transform_0(%arg0: i32, %arg1: i32) -> (i32, i32, i32) {
    %c0_i32 = arith.constant 0 : i32
    %c0_i32_0 = arith.constant 0 : i32
    return %arg0, %c0_i32, %arg1 : i32, i32, i32
  }
  func.func @transform_1(%arg0: i32, %arg1: i32) -> (i32, i32, i32) {
    %c0_i32 = arith.constant 0 : i32
    %c0_i32_0 = arith.constant 0 : i32
    %c0_i32_1 = arith.constant 0 : i32
    return %arg0, %c0_i32, %c0_i32_0 : i32, i32, i32
  }
}

</mosaic_0001>

<llo_original>
// kernel: tpu_custom_call.1
$region0: #{tpu_custom_call.1}
  #allocation0 [shape = 'u32[]', space=smem, size = 0x4, offset = 0x4, fixed_abs, tag = 'smem constant byte address 0x4 - core index']
  #allocation1 [shape = 'u32[72,128]{1,0:T(1,128)}', space=vmem, size = 0x9000, scoped, tag = 'internal scratch']
  #allocation2 [shape = 'f32[2,4,4]{2,1,0:T(4,128)}', space=vmem, size = 0x1000, scoped, tag = 'scratch operand']
  %s0 = inlined_call_operand.hbm [shape: f32[2,4,256], index: 0, kind: input, shape index: {}]
  %s1 = inlined_call_operand.hbm [shape: f32[2,4,4], index: 1, kind: output, shape index: {}]
  %s2 = sld [smem:[#allocation0]]
  $region26: #{tpu_custom_call.1} parent=0
    _
  %s4 = ssub.s32 1, %s2
  %s5 = scalar_select 0, %s4, %s2
  $region1: #{tpu_custom_call.1} parent=0
    #allocation3 [shape = 'u8[8192]{0}', space=vmem, size = 0x2000, scoped, tag = 'input window, operand 0, single buffered']
    #allocation4 [shape = 's32[1]{0}', space=sflag, size = 0x4, scoped, tag = 'scoped memory for tpu_custom_call.1']
    #allocation5 [shape = 's32[1]{0}', space=sflag, size = 0x4, scoped, tag = 'scoped memory for tpu_custom_call.1']
    #allocation6 [shape = 'u8[4096]{0}', space=vmem, size = 0x1000, scoped, tag = 'output window, operand 0, single buffered']
    %6 = vsyncpa [#allocation4], 0
    %7 = vsyncpa [#allocation5], 0
    // Predicated region
    $region2: #{tpu_custom_call.1} parent=1 // pred_check
      _
    $region3: #{tpu_custom_call.1} parent=1 // pred_check_branch
      %9 = sbr.rel (0) target = $region5
    $region4: #{tpu_custom_call.1} parent=1 // pred_region
      %11 = vsyncadd [#allocation4], 0
      %s12 = sshll.u32 %s0, 4
      %s13 = int_to_ptr.hbm [resolvable:$true] %s12
      %s14 = sshll.u32 [#allocation3], 4
      %s15 = int_to_ptr.vmem [resolvable:$true] %s14
      %20 = dma.hbm_to_vmem [thread:$0]  %s13, 256, %s15, [#allocation4], 128, 128, 8
    $region5: #{tpu_custom_call.1} parent=1 // pred_fallthru
      _
    // Predicated region
    $region6: #{tpu_custom_call.1} parent=1 // pred_check
      _
    $region7: #{tpu_custom_call.1} parent=1 // pred_check_branch
      %22 = sbr.rel (0) target = $region9
    $region8: #{tpu_custom_call.1} parent=1 // pred_region
      %24 = dma.done [#allocation4], 256
    $region9: #{tpu_custom_call.1} parent=1 // pred_fallthru
      _
    %p26 = scmp.eq.s32.totalorder 0, 0
    // Predicated region
    $region10: #{tpu_custom_call.1} parent=1 // pred_check
      %p27 = pneg %p26
    $region11: #{tpu_custom_call.1} parent=1 // pred_check_branch
      %29 = sbr.rel (%p27) target = $region13
    $region12: #{tpu_custom_call.1} parent=1 // pred_region
      %vm30 = vcmask 27648
      %31 = vst.msk [vmem:[#allocation2] sm:$0xf] %vm30, 0.0
      %32 = vst.msk [vmem:[#allocation2 + $0x4] sm:$0xf] %vm30, 0.0
    $region13: #{tpu_custom_call.1} parent=1 // pred_fallthru
      _
    %v33 = vld [vmem:[#allocation3] sm:$0xff]
    %v34 = vld [vmem:[#allocation3 + $0x8] sm:$0xff]
    %37 = vst [vmem:[#allocation1] ss:$2 sm:$0xff] %v33
    %v38 = vld.sshfl [vmem:[#allocation1] sm:$0xff pattern:$0x75316420]
    %v39 = vld.sshfl [vmem:[#allocation1 + $0x8] sm:$0xff pattern:$0x75316420]
    %s40 = scalar_lea.vmem [#allocation1], 16
    %41 = vst [vmem:[%s40] ss:$2 sm:$0xff] %v34
    %v42 = vld.sshfl [vmem:[#allocation1 + $0x10] sm:$0xff pattern:$0x75316420]
    %v43 = vld.sshfl [vmem:[#allocation1 + $0x18] sm:$0xff pattern:$0x75316420]
    %v48 = vpack.c.bf16 %v39, %v38
    %v49 = vpack.c.bf16 %v43, %v42
    %v50 = vld [vmem:[#allocation2] sm:$0xf]
    %v51 = vld [vmem:[#allocation2 + $0x4] sm:$0xf]
    %v53 = vunpack.c.l.b16 %v48
    %v54 = vunpack.c.h.b16 %v48
    %v55 = vpack.c.b16 %v53, %v53
    %v56 = vpack.c.b16 %v54, %v54
    %59 = vmatpush.bf16.xpose.msra.mxu0 0
    %60 = vmatpush.bf16.xpose.msra.mxu0 0
    %61 = vmatpush.bf16.xpose.msra.mxu0 0
    %62 = vmatpush.bf16.xpose.msra.mxu0 0
    %63 = vmatpush.bf16.xpose.msra.mxu0 0
    %64 = vmatpush.bf16.xpose.msra.mxu0 0
    %65 = vmatpush.bf16.xpose.msra.mxu0 0
    %66 = vmatpush.bf16.xpose.msra.mxu0 %v55
    %67 = vmatmul.bf16.gmra.mxu0 %v55
    %v68 = vpop.f32.mrf.mxu0
    %v69 = vadd.f32 0.0, %v68
    %v70 = vpop.f32.mrf.mxu0
    %71 = vdwg.mxu0
    %72 = vmatpush.bf16.xpose.msra.mxu0 0
    %73 = vmatpush.bf16.xpose.msra.mxu0 0
    %74 = vmatpush.bf16.xpose.msra.mxu0 0
    %75 = vmatpush.bf16.xpose.msra.mxu0 0
    %76 = vmatpush.bf16.xpose.msra.mxu0 0
    %77 = vmatpush.bf16.xpose.msra.mxu0 0
    %78 = vmatpush.bf16.xpose.msra.mxu0 0
    %79 = vmatpush.bf16.xpose.msra.mxu0 %v56
    %80 = vmatmul.bf16.gmra.mxu0 %v56
    %v81 = vpop.f32.mrf.mxu0
    %v82 = vadd.f32 %v69, %v81
    %v83 = vpop.f32.mrf.mxu0
    %84 = vdwg.mxu0
    %v86 = vunpack.c.l.b16 %v49
    %v87 = vunpack.c.h.b16 %v49
    %v88 = vpack.c.b16 %v86, %v86
    %v89 = vpack.c.b16 %v87, %v87
    %92 = vmatpush.bf16.xpose.msra.mxu0 0
    %93 = vmatpush.bf16.xpose.msra.mxu0 0
    %94 = vmatpush.bf16.xpose.msra.mxu0 0
    %95 = vmatpush.bf16.xpose.msra.mxu0 0
    %96 = vmatpush.bf16.xpose.msra.mxu0 0
    %97 = vmatpush.bf16.xpose.msra.mxu0 0
    %98 = vmatpush.bf16.xpose.msra.mxu0 0
    %99 = vmatpush.bf16.xpose.msra.mxu0 %v88
    %100 = vmatmul.bf16.gmra.mxu0 %v88
    %v101 = vpop.f32.mrf.mxu0
    %v102 = vadd.f32 0.0, %v101
    %v103 = vpop.f32.mrf.mxu0
    %104 = vdwg.mxu0
    %105 = vmatpush.bf16.xpose.msra.mxu0 0
    %106 = vmatpush.bf16.xpose.msra.mxu0 0
    %107 = vmatpush.bf16.xpose.msra.mxu0 0
    %108 = vmatpush.bf16.xpose.msra.mxu0 0
    %109 = vmatpush.bf16.xpose.msra.mxu0 0
    %110 = vmatpush.bf16.xpose.msra.mxu0 0
    %111 = vmatpush.bf16.xpose.msra.mxu0 0
    %112 = vmatpush.bf16.xpose.msra.mxu0 %v89
    %113 = vmatmul.bf16.gmra.mxu0 %v89
    %v114 = vpop.f32.mrf.mxu0
    %v115 = vadd.f32 %v102, %v114
    %v116 = vpop.f32.mrf.mxu0
    %117 = vdwg.mxu0
    %v118 = vadd.f32 %v50, %v82
    %v119 = vadd.f32 %v51, %v115
    %vm120 = vcmask 27648
    %121 = vst.msk [vmem:[#allocation2] sm:$0xf] %vm120, %v118
    %122 = vst.msk [vmem:[#allocation2 + $0x4] sm:$0xf] %vm120, %v119
    // Predicated region
    $region14: #{tpu_custom_call.1} parent=1 // pred_check
      %p123 = pneg %p26
    $region15: #{tpu_custom_call.1} parent=1 // pred_check_branch
      %125 = sbr.rel (%p123) target = $region17
    $region16: #{tpu_custom_call.1} parent=1 // pred_region
      %v126 = vld [vmem:[#allocation2] sm:$0xf]
      %v127 = vld [vmem:[#allocation2 + $0x4] sm:$0xf]
      %v128 = vmul.f32 %v126, 0.0009765625
      %v129 = vmul.f32 %v127, 0.0009765625
      %130 = vst.msk [vmem:[#allocation6] sm:$0xf] %vm120, %v128
      %131 = vst.msk [vmem:[#allocation6 + $0x4] sm:$0xf] %vm120, %v129
    $region17: #{tpu_custom_call.1} parent=1 // pred_fallthru
      _
    // Predicated region
    $region18: #{tpu_custom_call.1} parent=1 // pred_check
      _
    $region19: #{tpu_custom_call.1} parent=1 // pred_check_branch
      %133 = sbr.rel (0) target = $region21
    $region20: #{tpu_custom_call.1} parent=1 // pred_region
      %135 = vsyncadd [#allocation5], 0
      %s136 = sshll.u32 [#allocation6], 4
      %s137 = int_to_ptr.vmem [resolvable:$true] %s136
      %s138 = sshll.u32 %s1, 4
      %s139 = int_to_ptr.hbm [resolvable:$true] %s138
      %144 = dma.vmem_to_hbm [thread:$0]  %s137, 128, %s139, [#allocation5], 64, 64, 4
    $region21: #{tpu_custom_call.1} parent=1 // pred_fallthru
      _
    // Predicated region
    $region22: #{tpu_custom_call.1} parent=1 // pred_check
      _
    $region23: #{tpu_custom_call.1} parent=1 // pred_check_branch
      %146 = sbr.rel (0) target = $region25
    $region24: #{tpu_custom_call.1} parent=1 // pred_region
      %148 = dma.done [#allocation5], 128
    $region25: #{tpu_custom_call.1} parent=1 // pred_fallthru
      _
    %149 = vsyncpa [#allocation4], 1
    %150 = vsyncpa [#allocation5], 1

</llo_original>
